<compile_context>
chip_gen: v7x
topology: tpu7x:2x2x1
jax: 0.10.0
libtpu: 0.0.40
codegen_flags: <defaults>
</compile_context>

<pallas_src>
import functools

import jax
import jax.numpy as jnp
from jax.experimental import pallas as pl
from jax.experimental.pallas import tpu as pltpu


def _ceil_to(v: int, m: int) -> int:
    return ((v + m - 1) // m) * m


def _ac_kernel(x_ref, w_ref, bc_ref, bs_ref, out_cls_ref, out_sig_ref, *, n_cls):
    # One fused MXU matmul: (TN, P*F) @ (P*F, P*C + P), f32 accumulation.
    logits = jnp.dot(x_ref[...], w_ref[...], preferred_element_type=jnp.float32)
    # Class logits: first n_cls = P*C columns (dense store at lane offset 0).
    out_cls_ref[...] = (logits[:, :n_cls] + bc_ref[...]).astype(out_cls_ref.dtype)
    # Real/fake probability: sigmoid only on the last P columns (minimal EUP).
    out_sig_ref[...] = jax.nn.sigmoid(
        logits[:, n_cls:] + bs_ref[...]).astype(out_sig_ref.dtype)


def ac_module_forward(x, wc, bc, ws, bs, filters, *,
                      compute_dtype=None,
                      block_bytes=8 * 1024 * 1024,
                      xla_fast_path_rows=4096):
    """Pallas implementation of ACModule.forward.

    x : any shape whose flattened trailing size is a multiple of filters*2
    wc: (nclasses, F) torch-style weight of classifier_c      (F = filters*2)
    bc: (nclasses,)
    ws: (1, F)        torch-style weight of classifier_s
    bs: (1,)
    compute_dtype : dtype used to stream x / weights (e.g. jnp.bfloat16).
                    None keeps x's dtype.  Accumulation/bias/sigmoid stay f32.
    block_bytes   : per-step streamed-VMEM budget used to size the row tile.
    xla_fast_path_rows : below this many rows, skip Pallas and use plain XLA.
    Returns (real_prob (N,), class_prob (N, nclasses)), both float32.
    """
    F = filters * 2
    x2d = x.reshape(-1, F)                       # (N, F) — free contiguous reshape
    N = x2d.shape[0]
    C = wc.shape[0]

    if compute_dtype is None:
        compute_dtype = x2d.dtype
    compute_dtype = jnp.dtype(compute_dtype)

    # ---- small-N fast path: launch overhead would dominate --------------------
    if N < xla_fast_path_rows:
        xf = x2d.astype(jnp.float32)
        class_prob = xf @ wc.astype(jnp.float32).T + bc.astype(jnp.float32)
        real_prob = jax.nn.sigmoid(
            xf @ ws.astype(jnp.float32).T + bs.astype(jnp.float32)).reshape(-1)
        return real_prob, class_prob

    # ---- lane-dense row packing: P logical rows per physical row --------------
    p_cap = max(1, 256 // F)                     # keep MXU contraction depth <= ~256
    P = 1
    for cand in (8, 4, 2):
        if cand <= p_cap and N % cand == 0:
            P = cand
            break
    Np = N // P
    Fp = P * F
    n_cls = P * C
    n_sig = P

    # Fused, block-diagonal weights (tiny; built once in the wrapper).
    eye_p = jnp.eye(P, dtype=jnp.float32)
    w_cls = jnp.kron(eye_p, wc.astype(jnp.float32).T)        # (P*F, P*C)
    w_sig = jnp.kron(eye_p, ws.astype(jnp.float32).T)        # (P*F, P)
    w_big = jnp.concatenate([w_cls, w_sig], axis=1).astype(compute_dtype)
    b_cls = jnp.tile(bc.astype(jnp.float32), P).reshape(1, n_cls)
    b_sig = jnp.tile(bs.astype(jnp.float32), P).reshape(1, n_sig)

    # Lane-dense input view; cast only if a different streaming dtype was asked.
    xp = x2d.reshape(Np, Fp).astype(compute_dtype)

    # ---- row tile: large enough to amortize per-step overhead -----------------
    lane = 128
    itemsize = compute_dtype.itemsize
    per_row_vmem = (_ceil_to(Fp, lane) * itemsize            # x tile row
                    + _ceil_to(n_cls, lane) * 4              # class-out row (f32)
                    + _ceil_to(n_sig, lane) * 4)             # sigmoid-out row (f32)
    target_rows = max(8, (block_bytes // per_row_vmem) // 8 * 8)
    # Keep >= ~4 grid steps when there is enough work (feeds both v7x TCs).
    steps_rows = max(8, _ceil_to(-(-Np // 4), 8))
    TN = min(target_rows, steps_rows)
    if TN > Np:
        TN = Np                                   # single full-array block
    grid = (pl.cdiv(Np, TN),)                     # partial last block: Pallas-masked

    kernel = functools.partial(_ac_kernel, n_cls=n_cls)
    out_cls, out_sig = pl.pallas_call(
        kernel,
        out_shape=(
            jax.ShapeDtypeStruct((Np, n_cls), jnp.float32),
            jax.ShapeDtypeStruct((Np, n_sig), jnp.float32),
        ),
        grid_spec=pltpu.PrefetchScalarGridSpec(
            num_scalar_prefetch=0,
            grid=grid,
            in_specs=[
                pl.BlockSpec((TN, Fp), lambda i: (i, 0)),            # x (streamed)
                pl.BlockSpec((Fp, n_cls + n_sig), lambda i: (0, 0)),  # W (resident)
                pl.BlockSpec((1, n_cls), lambda i: (0, 0)),           # bias_c
                pl.BlockSpec((1, n_sig), lambda i: (0, 0)),           # bias_s
            ],
            out_specs=[
                pl.BlockSpec((TN, n_cls), lambda i: (i, 0)),
                pl.BlockSpec((TN, n_sig), lambda i: (i, 0)),
            ],
        ),
        compiler_params=pltpu.CompilerParams(
            dimension_semantics=("parallel",),          # megacore sharding on v7x
            vmem_limit_bytes=48 * 1024 * 1024,          # headroom on v7x (64 MiB)
        ),
    )(xp, w_big, b_cls, b_sig)

    # Unpack: free contiguous reshapes (packed row r, slot p  ->  row r*P + p).
    class_prob = out_cls.reshape(N, C)
    real_prob = out_sig.reshape(N)
    return real_prob, class_prob


if __name__ == "__main__":
    # Small shapes consistent with the module: x.view(-1, filters*2).
    filters = 16              # F = filters*2 = 32
    nclasses = 10
    F = filters * 2
    batch, groups = 2, 8      # -> N = 16 rows

    key = jax.random.PRNGKey(0)
    kx, kwc, kbc, kws, kbs, kx2 = jax.random.split(key, 6)

    x = jax.random.normal(kx, (batch, groups, F), dtype=jnp.float32)

    bound = 1.0 / (F ** 0.5)
    wc = jax.random.uniform(kwc, (nclasses, F), minval=-bound, maxval=bound,
                            dtype=jnp.float32)
    bc = jax.random.uniform(kbc, (nclasses,), minval=-bound, maxval=bound,
                            dtype=jnp.float32)
    ws = jax.random.uniform(kws, (1, F), minval=-bound, maxval=bound,
                            dtype=jnp.float32)
    bs = jax.random.uniform(kbs, (1,), minval=-bound, maxval=bound,
                            dtype=jnp.float32)

    def ref_forward(xi):
        x2 = xi.reshape(-1, F)
        return (jax.nn.sigmoid(x2 @ ws.T + bs).reshape(-1), x2 @ wc.T + bc)

    # 1) Pallas path (forced), f32 streaming, P=8 packing.
    real_p, class_p = ac_module_forward(x, wc, bc, ws, bs, filters,
                                        xla_fast_path_rows=0)
    jax.block_until_ready((real_p, class_p))
    ref_r, ref_c = ref_forward(x)
    assert real_p.shape == (batch * groups,)
    assert class_p.shape == (batch * groups, nclasses)
    assert jnp.allclose(real_p, ref_r, atol=1e-4)
    assert jnp.allclose(class_p, ref_c, atol=1e-4)

    # 2) Pallas path with a row count that forces P=2 and a partial last tile.
    x2 = jax.random.normal(kx2, (210, F), dtype=jnp.float32)   # N = 210
    real_p2, class_p2 = ac_module_forward(x2, wc, bc, ws, bs, filters,
                                          xla_fast_path_rows=0)
    jax.block_until_ready((real_p2, class_p2))
    ref_r2, ref_c2 = ref_forward(x2)
    assert jnp.allclose(real_p2, ref_r2, atol=1e-4)
    assert jnp.allclose(class_p2, ref_c2, atol=1e-4)

    # 3) Pallas path with bf16 streaming (f32 accumulation + epilogue).
    real_b, class_b = ac_module_forward(x, wc, bc, ws, bs, filters,
                                        compute_dtype=jnp.bfloat16,
                                        xla_fast_path_rows=0)
    jax.block_until_ready((real_b, class_b))
    assert jnp.allclose(real_b, ref_r, atol=5e-2)
    assert jnp.allclose(class_b, ref_c, atol=5e-2)

    # 4) Default call takes the small-N XLA fast path for these tiny shapes.
    real_f, class_f = ac_module_forward(x, wc, bc, ws, bs, filters)
    jax.block_until_ready((real_f, class_f))
    assert jnp.allclose(real_f, ref_r, atol=1e-5)
    assert jnp.allclose(class_f, ref_c, atol=1e-5)

    print("KERNEL_OK")
</pallas_src>

<mosaic_0001>
module attributes {stable_mosaic.version = 11 : i64} {
  func.func @_ac_kernel(%arg0: i32, %arg1: memref<2x256xf32, #tpu.memory_space<vmem>>, %arg2: memref<256x88xf32, #tpu.memory_space<vmem>>, %arg3: memref<1x80xf32, #tpu.memory_space<vmem>>, %arg4: memref<1x8xf32, #tpu.memory_space<vmem>>, %arg5: memref<2x80xf32, #tpu.memory_space<vmem>>, %arg6: memref<2x8xf32, #tpu.memory_space<vmem>>) attributes {dimension_semantics = [#tpu.dimension_semantics<parallel>], iteration_bounds = array<i64: 1>, scalar_prefetch = 0 : i64, scratch_operands = 0 : i64, tpu.core_type = #tpu.core_type<tc>, window_params = [{transform_indices = @transform_0, window_bounds = array<i64: 2, 256>}, {pipeline_mode = #tpu.pipeline_mode<synchronous>, transform_indices = @transform_1, window_bounds = array<i64: 256, 88>}, {pipeline_mode = #tpu.pipeline_mode<synchronous>, transform_indices = @transform_2, window_bounds = array<i64: 1, 80>}, {pipeline_mode = #tpu.pipeline_mode<synchronous>, transform_indices = @transform_3, window_bounds = array<i64: 1, 8>}, {transform_indices = @transform_4, window_bounds = array<i64: 2, 80>}, {transform_indices = @transform_5, window_bounds = array<i64: 2, 8>}]} {
    %c0 = arith.constant 0 : index
    %c0_0 = arith.constant 0 : index
    %0 = vector.load %arg1[%c0, %c0_0] : memref<2x256xf32, #tpu.memory_space<vmem>>, vector<2x256xf32>
    %c0_1 = arith.constant 0 : index
    %c0_2 = arith.constant 0 : index
    %1 = vector.load %arg2[%c0_1, %c0_2] : memref<256x88xf32, #tpu.memory_space<vmem>>, vector<256x88xf32>
    %cst = arith.constant dense<0.000000e+00> : vector<2x88xf32>
    %2 = tpu.matmul %0, %1, %cst {dimension_numbers = #tpu.dot_dimension_numbers<[1], [0], [0], [1], [0, 0, 1, 1], [], []>} : vector<2x256xf32>, vector<256x88xf32>, vector<2x88xf32> -> vector<2x88xf32>
    %3 = vector.extract_strided_slice %2 {offsets = [0, 0], sizes = [2, 80], strides = [1, 1]} : vector<2x88xf32> to vector<2x80xf32>
    %c0_3 = arith.constant 0 : index
    %c0_4 = arith.constant 0 : index
    %4 = vector.load %arg3[%c0_3, %c0_4] : memref<1x80xf32, #tpu.memory_space<vmem>>, vector<1x80xf32>
    %5 = vector.broadcast %4 : vector<1x80xf32> to vector<2x80xf32>
    %6 = arith.addf %3, %5 : vector<2x80xf32>
    %c0_5 = arith.constant 0 : index
    %c0_6 = arith.constant 0 : index
    %7 = vector.load %arg5[%c0_5, %c0_6] : memref<2x80xf32, #tpu.memory_space<vmem>>, vector<2x80xf32>
    tpu.vector_store %arg5[%c0_5, %c0_6], %6 {strides = array<i32>} : memref<2x80xf32, #tpu.memory_space<vmem>>, vector<2x80xf32>,
    %8 = vector.extract_strided_slice %2 {offsets = [0, 80], sizes = [2, 8], strides = [1, 1]} : vector<2x88xf32> to vector<2x8xf32>
    %c0_7 = arith.constant 0 : index
    %c0_8 = arith.constant 0 : index
    %9 = vector.load %arg4[%c0_7, %c0_8] : memref<1x8xf32, #tpu.memory_space<vmem>>, vector<1x8xf32>
    %10 = vector.broadcast %9 : vector<1x8xf32> to vector<2x8xf32>
    %11 = arith.addf %8, %10 : vector<2x8xf32>
    %12 = arith.negf %11 : vector<2x8xf32>
    %13 = math.exp %12 : vector<2x8xf32>
    %cst_9 = arith.constant 1.000000e+00 : f32
    %14 = vector.broadcast %cst_9 : f32 to vector<2x8xf32>
    %15 = arith.addf %14, %13 : vector<2x8xf32>
    %16 = arith.divf %14, %15 : vector<2x8xf32>
    %c0_10 = arith.constant 0 : index
    %c0_11 = arith.constant 0 : index
    %17 = vector.load %arg6[%c0_10, %c0_11] : memref<2x8xf32, #tpu.memory_space<vmem>>, vector<2x8xf32>
    tpu.vector_store %arg6[%c0_10, %c0_11], %16 {strides = array<i32>} : memref<2x8xf32, #tpu.memory_space<vmem>>, vector<2x8xf32>,
    return
  }
  func.func @transform_0(%arg0: i32) -> (i32, i32) {
    %c0_i32 = arith.constant 0 : i32
    %c0_i32_0 = arith.constant 0 : i32
    return %arg0, %c0_i32 : i32, i32
  }
  func.func @transform_1(%arg0: i32) -> (i32, i32) {
    %c0_i32 = arith.constant 0 : i32
    %c0_i32_0 = arith.constant 0 : i32
    %c0_i32_1 = arith.constant 0 : i32
    return %c0_i32, %c0_i32_0 : i32, i32
  }
  func.func @transform_2(%arg0: i32) -> (i32, i32) {
    %c0_i32 = arith.constant 0 : i32
    %c0_i32_0 = arith.constant 0 : i32
    %c0_i32_1 = arith.constant 0 : i32
    return %c0_i32, %c0_i32_0 : i32, i32
  }
  func.func @transform_3(%arg0: i32) -> (i32, i32) {
    %c0_i32 = arith.constant 0 : i32
    %c0_i32_0 = arith.constant 0 : i32
    %c0_i32_1 = arith.constant 0 : i32
    return %c0_i32, %c0_i32_0 : i32, i32
  }
  func.func @transform_4(%arg0: i32) -> (i32, i32) {
    %c0_i32 = arith.constant 0 : i32
    %c0_i32_0 = arith.constant 0 : i32
    return %arg0, %c0_i32 : i32, i32
  }
  func.func @transform_5(%arg0: i32) -> (i32, i32) {
    %c0_i32 = arith.constant 0 : i32
    %c0_i32_0 = arith.constant 0 : i32
    return %arg0, %c0_i32 : i32, i32
  }
}

</mosaic_0001>

<llo_original>
// kernel: tpu_custom_call.1
$region0: #{tpu_custom_call.1}
  #allocation0 [shape = 'u32[]', space=smem, size = 0x4, offset = 0x4, fixed_abs, tag = 'smem constant byte address 0x4 - core index']
  #allocation1 [shape = 'u32[144,128]{1,0:T(1,128)}', space=vmem, size = 0x12000, scoped, tag = 'internal scratch']
  %s0 = inlined_call_operand.vmem [shape: f32[2,256], index: 0, kind: input, shape index: {}]
  %s1 = inlined_call_operand.vmem [shape: f32[256,88], index: 1, kind: input, shape index: {}]
  %s2 = inlined_call_operand.vmem [shape: f32[1,80], index: 2, kind: input, shape index: {}]
  %s3 = inlined_call_operand.vmem [shape: f32[1,8], index: 3, kind: input, shape index: {}]
  %s4 = inlined_call_operand.hbm [shape: f32[2,80], index: 4, kind: output, shape index: {0}]
  %s5 = inlined_call_operand.hbm [shape: f32[2,8], index: 5, kind: output, shape index: {1}]
  %6 = xla_tuple %s4, %s5
  %s7 = sld [smem:[#allocation0]]
  $region34: #{tpu_custom_call.1} parent=0
    _
  %s9 = ssub.s32 1, %s7
  %s10 = scalar_select 0, %s9, %s7
  $region1: #{tpu_custom_call.1} parent=0
    #allocation2 [shape = 'u8[1024]{0}', space=vmem, size = 0x400, scoped, tag = 'output window, operand 0, single buffered']
    #allocation3 [shape = 's32[1]{0}', space=sflag, size = 0x4, scoped, tag = 'scoped memory for tpu_custom_call.1']
    #allocation4 [shape = 'u8[1024]{0}', space=vmem, size = 0x400, scoped, tag = 'output window, operand 1, single buffered']
    #allocation5 [shape = 's32[1]{0}', space=sflag, size = 0x4, scoped, tag = 'scoped memory for tpu_custom_call.1']
    %11 = vsyncpa [#allocation3], 0
    %12 = vsyncpa [#allocation5], 0
    // Predicated region
    $region2: #{tpu_custom_call.1} parent=1 // pred_check
      _
    $region3: #{tpu_custom_call.1} parent=1 // pred_check_branch
      %14 = sbr.rel (0) target = $region5
    $region4: #{tpu_custom_call.1} parent=1 // pred_region
      _
    $region5: #{tpu_custom_call.1} parent=1 // pred_fallthru
      _
    // Predicated region
    $region6: #{tpu_custom_call.1} parent=1 // pred_check
      _
    $region7: #{tpu_custom_call.1} parent=1 // pred_check_branch
      %16 = sbr.rel (0) target = $region9
    $region8: #{tpu_custom_call.1} parent=1 // pred_region
      _
    $region9: #{tpu_custom_call.1} parent=1 // pred_fallthru
      _
    // Predicated region
    $region10: #{tpu_custom_call.1} parent=1 // pred_check
      _
    $region11: #{tpu_custom_call.1} parent=1 // pred_check_branch
      %18 = sbr.rel (0) target = $region13
    $region12: #{tpu_custom_call.1} parent=1 // pred_region
      _
    $region13: #{tpu_custom_call.1} parent=1 // pred_fallthru
      _
    // Predicated region
    $region14: #{tpu_custom_call.1} parent=1 // pred_check
      _
    $region15: #{tpu_custom_call.1} parent=1 // pred_check_branch
      %20 = sbr.rel (0) target = $region17
    $region16: #{tpu_custom_call.1} parent=1 // pred_region
      _
    $region17: #{tpu_custom_call.1} parent=1 // pred_fallthru
      _
    %v21 = vld [vmem:[%s0] sm:$0xf]
    %v22 = vld [vmem:[%s1] sm:$0xff]
    %v23 = vld [vmem:[%s1 + $0x8] sm:$0xff]
    %v24 = vld [vmem:[%s1 + $0x10] sm:$0xff]
    %v25 = vld [vmem:[%s1 + $0x18] sm:$0xff]
    %v26 = vld [vmem:[%s1 + $0x20] sm:$0xff]
    %v27 = vld [vmem:[%s1 + $0x28] sm:$0xff]
    %v28 = vld [vmem:[%s1 + $0x30] sm:$0xff]
    %v29 = vld [vmem:[%s1 + $0x38] sm:$0xff]
    %v30 = vld [vmem:[%s1 + $0x40] sm:$0xff]
    %v31 = vld [vmem:[%s1 + $0x48] sm:$0xff]
    %v32 = vld [vmem:[%s1 + $0x50] sm:$0xff]
    %v33 = vld [vmem:[%s1 + $0x58] sm:$0xff]
    %v34 = vld [vmem:[%s1 + $0x60] sm:$0xff]
    %v35 = vld [vmem:[%s1 + $0x68] sm:$0xff]
    %v36 = vld [vmem:[%s1 + $0x70] sm:$0xff]
    %v37 = vld [vmem:[%s1 + $0x78] sm:$0xff]
    %v38 = vld [vmem:[%s1 + $0x80] sm:$0xff]
    %v39 = vld [vmem:[%s1 + $0x88] sm:$0xff]
    %v40 = vld [vmem:[%s1 + $0x90] sm:$0xff]
    %v41 = vld [vmem:[%s1 + $0x98] sm:$0xff]
    %v42 = vld [vmem:[%s1 + $0xa0] sm:$0xff]
    %v43 = vld [vmem:[%s1 + $0xa8] sm:$0xff]
    %v44 = vld [vmem:[%s1 + $0xb0] sm:$0xff]
    %v45 = vld [vmem:[%s1 + $0xb8] sm:$0xff]
    %v46 = vld [vmem:[%s1 + $0xc0] sm:$0xff]
    %v47 = vld [vmem:[%s1 + $0xc8] sm:$0xff]
    %v48 = vld [vmem:[%s1 + $0xd0] sm:$0xff]
    %v49 = vld [vmem:[%s1 + $0xd8] sm:$0xff]
    %v50 = vld [vmem:[%s1 + $0xe0] sm:$0xff]
    %v51 = vld [vmem:[%s1 + $0xe8] sm:$0xff]
    %v52 = vld [vmem:[%s1 + $0xf0] sm:$0xff]
    %v53 = vld [vmem:[%s1 + $0xf8] sm:$0xff]
    %v56 = vunpack.c.l.s4 1983009808
    %v57 = vunpack.c.0.s8 %v56
    %v58 = vlaneseq
    %v59 = vshrl.u32 %v58, 7
    %v60 = vsub.s32 %v57, %v59
    %v61 = vrot.slane %v21, %v60
    %v62 = vcombine.high %v61, %v61
    %65 = vmatprep.subr.mxu0 0.0
    %66 = vmatpush1.msra.mxu0 %v22
    %67 = vmatprep.subr.mxu0 0.0
    %68 = vmatpush1.msra.mxu0 %v23
    %69 = vmatprep.subr.mxu0 0.0
    %70 = vmatpush1.msra.mxu0 %v24
    %71 = vmatprep.subr.mxu0 0.0
    %72 = vmatpush1.msra.mxu0 %v25
    %73 = vmatprep.subr.mxu0 0.0
    %74 = vmatpush1.msra.mxu0 %v26
    %75 = vmatprep.subr.mxu0 0.0
    %76 = vmatpush1.msra.mxu0 %v27
    %77 = vmatprep.subr.mxu0 0.0
    %78 = vmatpush1.msra.mxu0 %v28
    %79 = vmatprep.subr.mxu0 0.0
    %80 = vmatpush1.msra.mxu0 %v29
    %81 = vmatprep.subr.mxu0 0.0
    %82 = vmatpush1.msra.mxu0 %v30
    %83 = vmatprep.subr.mxu0 0.0
    %84 = vmatpush1.msra.mxu0 %v31
    %85 = vmatprep.subr.mxu0 0.0
    %86 = vmatpush1.msra.mxu0 %v32
    %87 = vmatprep.subr.mxu0 0.0
    %88 = vmatpush1.msra.mxu0 %v33
    %89 = vmatprep.subr.mxu0 0.0
    %90 = vmatpush1.msra.mxu0 %v34
    %91 = vmatprep.subr.mxu0 0.0
    %92 = vmatpush1.msra.mxu0 %v35
    %93 = vmatprep.subr.mxu0 0.0
    %94 = vmatpush1.msra.mxu0 %v36
    %95 = vmatprep.subr.mxu0 0.0
    %96 = vmatpush1.msra.mxu0 %v37
    %97 = vmatprep.subr.mxu0 0.0
    %98 = vmatpush1.msra.mxu0 %v38
    %99 = vmatprep.subr.mxu0 0.0
    %100 = vmatpush1.msra.mxu0 %v39
    %101 = vmatprep.subr.mxu0 0.0
    %102 = vmatpush1.msra.mxu0 %v40
    %103 = vmatprep.subr.mxu0 0.0
    %104 = vmatpush1.msra.mxu0 %v41
    %105 = vmatprep.subr.mxu0 0.0
    %106 = vmatpush1.msra.mxu0 %v42
    %107 = vmatprep.subr.mxu0 0.0
    %108 = vmatpush1.msra.mxu0 %v43
    %109 = vmatprep.subr.mxu0 0.0
    %110 = vmatpush1.msra.mxu0 %v44
    %111 = vmatprep.subr.mxu0 0.0
    %112 = vmatpush1.msra.mxu0 %v45
    %113 = vmatprep.subr.mxu0 0.0
    %114 = vmatpush1.msra.mxu0 %v46
    %115 = vmatprep.subr.mxu0 0.0
    %116 = vmatpush1.msra.mxu0 %v47
    %117 = vmatprep.subr.mxu0 0.0
    %118 = vmatpush1.msra.mxu0 %v48
    %119 = vmatprep.subr.mxu0 0.0
    %120 = vmatpush1.msra.mxu0 %v49
    %121 = vmatprep.subr.mxu0 0.0
    %122 = vmatpush1.msra.mxu0 %v50
    %123 = vmatprep.subr.mxu0 0.0
    %124 = vmatpush1.msra.mxu0 %v51
    %125 = vmatprep.subr.mxu0 0.0
    %126 = vmatpush1.msra.mxu0 %v52
    %127 = vmatprep.subr.mxu0 0.0
    %128 = vmatpush1.msra.mxu0 %v53
    %129 = vmatprep.mubr.f32.mxu0 %v62
    %130 = vmatmul.mubr.f32.gmra.mrb[0].mxu0 %v61
    %v131 = vpop.f32.mrb[0].mxu0
    %v132 = vadd.f32 0.0, %v131
    %v133 = vpop.f32.mrb[0].mxu0
    %134 = vdwg.mxu0
    %v135 = vld [vmem:[%s2] sm:$0x1]
    %v137 = vlaneseq
    %v138 = vshrl.u32 %v137, 7
    %v139 = vsub.s32 0, %v138
    %v140 = vrot.slane %v135, %v139
    %v142 = vadd.f32 %v132, %v140
    %vm143 = vcmask 648192
    %144 = vst.msk [vmem:[#allocation2] sm:$0x3] %vm143, %v142
    %v145 = vld [vmem:[%s3] sm:$0x1]
    %v147 = vlaneseq
    %v148 = vshrl.u32 %v147, 7
    %v149 = vsub.s32 0, %v148
    %v150 = vrot.slane %v145, %v149
    %151 = vrot.lane.b32.xlu0 %v150, 80
    %v152 = vpop.permute.xlu0 %151
    %v154 = vadd.f32 %v132, %v152
    %v155 = vxor.u32 %v154, 2147483648
    %v156 = vmul.f32 %v155, 1.442695
    %v157 = vpow.pop %v156
    %v158 = vadd.f32 %v157, 1.0
    %v159 = vrcp.pop %v158
    %v160 = vmul.f32 1.0, %v159
    %162 = vrot.lane.b32.xlu0 %v160, 48
    %v163 = vpop.permute.xlu0 %162
    %vm165 = vcmask 58368
    %166 = vst.msk [vmem:[#allocation4] sm:$0x3] %vm165, %v163
    // Predicated region
    $region18: #{tpu_custom_call.1} parent=1 // pred_check
      _
    $region19: #{tpu_custom_call.1} parent=1 // pred_check_branch
      %168 = sbr.rel (0) target = $region21
    $region20: #{tpu_custom_call.1} parent=1 // pred_region
      %s170 = ssub.s32 32, 32
      %171 = vsyncadd [#allocation3], %s170
      %s173 = sshll.u32 [#allocation2], 4
      %s174 = int_to_ptr.vmem [resolvable:$true] %s173
      %176 = dma.vmem_to_hbm [thread:$0]  %s174, 32, %s4, [#allocation3]
    $region21: #{tpu_custom_call.1} parent=1 // pred_fallthru
      _
    // Predicated region
    $region22: #{tpu_custom_call.1} parent=1 // pred_check
      _
    $region23: #{tpu_custom_call.1} parent=1 // pred_check_branch
      %178 = sbr.rel (0) target = $region25
    $region24: #{tpu_custom_call.1} parent=1 // pred_region
      %s180 = ssub.s32 32, 32
      %181 = vsyncadd [#allocation5], %s180
      %s183 = sshll.u32 [#allocation4], 4
      %s184 = int_to_ptr.vmem [resolvable:$true] %s183
      %186 = dma.vmem_to_hbm [thread:$0]  %s184, 32, %s5, [#allocation5]
    $region25: #{tpu_custom_call.1} parent=1 // pred_fallthru
      _
    // Predicated region
    $region26: #{tpu_custom_call.1} parent=1 // pred_check
      _
    $region27: #{tpu_custom_call.1} parent=1 // pred_check_branch
      %188 = sbr.rel (0) target = $region29
    $region28: #{tpu_custom_call.1} parent=1 // pred_region
      %189 = dma.done [#allocation3], 32
    $region29: #{tpu_custom_call.1} parent=1 // pred_fallthru
      _
    // Predicated region
    $region30: #{tpu_custom_call.1} parent=1 // pred_check
      _
    $region31: #{tpu_custom_call.1} parent=1 // pred_check_branch
      %191 = sbr.rel (0) target = $region33
    $region32: #{tpu_custom_call.1} parent=1 // pred_region
      %192 = dma.done [#allocation5], 32
    $region33: #{tpu_custom_call.1} parent=1 // pred_fallthru
      _
    %193 = vsyncpa [#allocation3], 1
    %194 = vsyncpa [#allocation5], 1

</llo_original>
